<compile_context>
chip_gen: v7x
topology: tpu7x:2x2x1
jax: 0.10.0
libtpu: 0.0.40
codegen_flags: <defaults>
</compile_context>

<pallas_src>
import jax
import jax.numpy as jnp
from jax import lax
from jax.experimental import pallas as pl
from jax.experimental.pallas import tpu as pltpu


def _make_kernel(ts, true_s, mask_s_tail):
    def kernel(hs_ref, mask_ref, out_ref, cnt_ref):
        # hs_ref:   (TB, TS, H)  hidden-state tile (native dtype)
        # mask_ref: (TB, TS)     attention-mask tile
        # out_ref:  (TB, H) f32  output tile, resident across the S axis
        # cnt_ref:  (TB, 1) f32  scratch mask-count accumulator
        s_idx = pl.program_id(1)

        @pl.when(s_idx == 0)
        def _():
            out_ref[...] = jnp.zeros_like(out_ref)
            cnt_ref[...] = jnp.zeros_like(cnt_ref)

        mask_f = mask_ref[...].astype(jnp.float32)                  # (TB, TS)
        # torch: hidden * mask.float() promotes the product to f32.
        prod = hs_ref[...].astype(jnp.float32) * mask_f[:, :, None]  # (TB, TS, H)

        if mask_s_tail:
            # Last S tile extends past the true sequence length: the DMA does
            # not fill the out-of-range tail, so zero it explicitly on both
            # the mask (count) and the product (NaN/Inf garbage safety).
            tb = mask_ref.shape[0]
            pos = s_idx * ts + lax.broadcasted_iota(jnp.int32, (tb, ts), 1)
            valid = pos < true_s
            mask_f = jnp.where(valid, mask_f, 0.0)
            prod = jnp.where(valid[:, :, None], prod, 0.0)

        out_ref[...] += jnp.sum(prod, axis=1)                        # (TB, H)
        cnt_ref[...] += jnp.sum(mask_f, axis=1, keepdims=True)       # (TB, 1)

        @pl.when(s_idx == pl.num_programs(1) - 1)
        def _():
            denom = jnp.maximum(cnt_ref[...], 1e-9)   # torch.clamp(min=1e-9)
            # Multiply-by-reciprocal keeps the epilogue off the VALU divide
            # path (approx=False: exact enough for f32 parity with division).
            out_ref[...] = out_ref[...] * pl.reciprocal(denom, approx=False)

    return kernel


def _choose_seq_tile(batch_tile, seq_len, hidden, hs_itemsize, block_budget_bytes):
    # Whole sequence per step when the hidden block fits the byte budget
    # (also covers small / non-128-multiple S: block dim == full dim is legal).
    if batch_tile * seq_len * hidden * hs_itemsize <= block_budget_bytes:
        return seq_len
    ts = block_budget_bytes // (batch_tile * hidden * hs_itemsize)
    # Mask tile's lane dim (TS) must be a multiple of 128 when TS != S.
    # TODO(synk): for extreme H (TS=128 block >> budget) also shrink TB.
    return max(128, (ts // 128) * 128)


def mean_pooling(last_hidden_state, attention_mask, *, block_budget_bytes=8 << 20):
    B, S, H = last_hidden_state.shape
    assert attention_mask.shape == (B, S)

    hs_itemsize = jnp.dtype(last_hidden_state.dtype).itemsize
    mask_itemsize = jnp.dtype(attention_mask.dtype).itemsize

    # 8 batch rows per step -> tile-aligned (8, H) output blocks; tiny batches
    # use the full batch (block dim == full dim is legal; on v7x this accepts
    # single-core occupancy rather than padding/copying the hidden tensor).
    TB = 8 if B >= 8 else B
    TS = _choose_seq_tile(TB, S, H, hs_itemsize, block_budget_bytes)

    grid = (pl.cdiv(B, TB), pl.cdiv(S, TS))
    mask_s_tail = (S % TS) != 0

    # Scoped-VMEM limit sized from the real double-buffered working set:
    # never below v5e's 16 MiB default, capped with headroom for v7x's 64 MiB
    # physical VMEM.
    hid_block = TB * TS * H * hs_itemsize
    msk_block = TB * TS * mask_itemsize
    out_block = TB * H * 4
    working = 2 * (hid_block + msk_block + out_block) + 8 * 128 * 4
    vmem_limit = int(working * 1.5) + (2 << 20)
    vmem_limit = max(vmem_limit, 16 << 20)
    vmem_limit = min(vmem_limit, 48 << 20)

    return pl.pallas_call(
        _make_kernel(TS, S, mask_s_tail),
        out_shape=jax.ShapeDtypeStruct((B, H), jnp.float32),
        grid_spec=pltpu.PrefetchScalarGridSpec(
            num_scalar_prefetch=0,
            grid=grid,
            in_specs=[
                pl.BlockSpec((TB, TS, H), lambda b, s: (b, s, 0)),
                pl.BlockSpec((TB, TS), lambda b, s: (b, s)),
            ],
            out_specs=pl.BlockSpec((TB, H), lambda b, s: (b, 0)),
            scratch_shapes=[pltpu.VMEM((TB, 1), jnp.float32)],
        ),
        compiler_params=pltpu.CompilerParams(
            dimension_semantics=("parallel", "arbitrary"),
            vmem_limit_bytes=vmem_limit,
        ),
        cost_estimate=pl.CostEstimate(
            flops=2 * B * S * H,
            transcendentals=0,
            bytes_accessed=B * S * H * hs_itemsize
            + B * S * mask_itemsize
            + B * H * 4,
        ),
    )(last_hidden_state, attention_mask)


def mean_pooling_ref(last_hidden_state, attention_mask):
    # Pure-JAX reference mirroring the PyTorch forward.
    mask = attention_mask[..., None].astype(jnp.float32)
    mask = jnp.broadcast_to(mask, last_hidden_state.shape)
    sum_emb = jnp.sum(last_hidden_state.astype(jnp.float32) * mask, axis=1)
    sum_mask = jnp.maximum(jnp.sum(mask, axis=1), 1e-9)
    return sum_emb / sum_mask


if __name__ == "__main__":
    key = jax.random.PRNGKey(0)
    k1, k2, k3, k4 = jax.random.split(key, 4)

    # Primary small test (BERT-like shapes, scaled down).
    B, S, H = 2, 8, 32
    hs = jax.random.normal(k1, (B, S, H), dtype=jnp.float32)
    mask = (jax.random.uniform(k2, (B, S)) > 0.3).astype(jnp.int32)
    out = jax.block_until_ready(mean_pooling(hs, mask))
    ref = mean_pooling_ref(hs, mask)
    assert out.shape == (B, H) and out.dtype == jnp.float32
    assert jnp.allclose(out, ref, atol=1e-5, rtol=1e-5), "mismatch vs reference (small)"

    # Second test: exercises sequence tiling + in-kernel tail masking
    # (S not a multiple of TS, no wrapper-side padding anywhere).
    B2, S2, H2 = 3, 300, 128
    hs2 = jax.random.normal(k3, (B2, S2, H2), dtype=jnp.float32)
    mask2 = (jax.random.uniform(k4, (B2, S2)) > 0.3).astype(jnp.int32)
    out2 = jax.block_until_ready(
        mean_pooling(hs2, mask2, block_budget_bytes=128 * 1024)
    )
    ref2 = mean_pooling_ref(hs2, mask2)
    assert jnp.allclose(out2, ref2, atol=1e-5, rtol=1e-5), "mismatch vs reference (tiled)"

    print("KERNEL_OK")
</pallas_src>

<mosaic_0001>
module attributes {stable_mosaic.version = 11 : i64} {
  func.func @kernel(%arg0: i32, %arg1: i32, %arg2: memref<2x8x32xf32, #tpu.memory_space<vmem>>, %arg3: memref<2x8xi32, #tpu.memory_space<vmem>>, %arg4: memref<2x32xf32, #tpu.memory_space<vmem>>, %arg5: memref<2x1xf32, #tpu.memory_space<vmem>>) attributes {dimension_semantics = [#tpu.dimension_semantics<parallel>, #tpu.dimension_semantics<arbitrary>], iteration_bounds = array<i64: 1, 1>, scalar_prefetch = 0 : i64, scratch_operands = 1 : i64, tpu.core_type = #tpu.core_type<tc>, window_params = [{transform_indices = @transform_0, window_bounds = array<i64: 2, 8, 32>}, {transform_indices = @transform_1, window_bounds = array<i64: 2, 8>}, {transform_indices = @transform_2, window_bounds = array<i64: 2, 32>}]} {
    %c0_i32 = arith.constant 0 : i32
    %0 = arith.cmpi eq, %arg1, %c0_i32 : i32
    %1 = arith.extui %0 : i1 to i32
    %c0_i32_0 = arith.constant 0 : i32
    %2 = arith.cmpi ne, %1, %c0_i32_0 : i32
    scf.if %2 {
      %cst_16 = arith.constant 0.000000e+00 : f32
      %21 = vector.broadcast %cst_16 : f32 to vector<2x32xf32>
      %c0_17 = arith.constant 0 : index
      %c0_18 = arith.constant 0 : index
      %22 = vector.load %arg4[%c0_17, %c0_18] : memref<2x32xf32, #tpu.memory_space<vmem>>, vector<2x32xf32>
      tpu.vector_store %arg4[%c0_17, %c0_18], %21 {strides = array<i32>} : memref<2x32xf32, #tpu.memory_space<vmem>>, vector<2x32xf32>,
      %cst_19 = arith.constant 0.000000e+00 : f32
      %23 = vector.broadcast %cst_19 : f32 to vector<2x1xf32>
      %c0_20 = arith.constant 0 : index
      %c0_21 = arith.constant 0 : index
      %24 = vector.load %arg5[%c0_20, %c0_21] : memref<2x1xf32, #tpu.memory_space<vmem>>, vector<2x1xf32>
      tpu.vector_store %arg5[%c0_20, %c0_21], %23 {strides = array<i32>} : memref<2x1xf32, #tpu.memory_space<vmem>>, vector<2x1xf32>,
    } else {
    }
    %c0 = arith.constant 0 : index
    %c0_1 = arith.constant 0 : index
    %3 = vector.load %arg3[%c0, %c0_1] : memref<2x8xi32, #tpu.memory_space<vmem>>, vector<2x8xi32>
    %4 = arith.sitofp %3 : vector<2x8xi32> to vector<2x8xf32>
    %c0_2 = arith.constant 0 : index
    %c0_3 = arith.constant 0 : index
    %c0_4 = arith.constant 0 : index
    %5 = vector.load %arg2[%c0_2, %c0_3, %c0_4] : memref<2x8x32xf32, #tpu.memory_space<vmem>>, vector<2x8x32xf32>
    %6 = vector.shape_cast %4 : vector<2x8xf32> to vector<2x8x1xf32>
    %7 = vector.broadcast %6 : vector<2x8x1xf32> to vector<2x8x32xf32>
    %8 = arith.mulf %5, %7 : vector<2x8x32xf32>
    %c0_5 = arith.constant 0 : index
    %c0_6 = arith.constant 0 : index
    %9 = vector.load %arg4[%c0_5, %c0_6] : memref<2x32xf32, #tpu.memory_space<vmem>>, vector<2x32xf32>
    %cst = arith.constant dense<0.000000e+00> : vector<2x32xf32>
    %10 = vector.multi_reduction <add>, %8, %cst [1] : vector<2x8x32xf32> to vector<2x32xf32>
    %11 = arith.addf %9, %10 : vector<2x32xf32>
    %c0_7 = arith.constant 0 : index
    %c0_8 = arith.constant 0 : index
    %12 = vector.load %arg4[%c0_7, %c0_8] : memref<2x32xf32, #tpu.memory_space<vmem>>, vector<2x32xf32>
    tpu.vector_store %arg4[%c0_7, %c0_8], %11 {strides = array<i32>} : memref<2x32xf32, #tpu.memory_space<vmem>>, vector<2x32xf32>,
    %c0_9 = arith.constant 0 : index
    %c0_10 = arith.constant 0 : index
    %13 = vector.load %arg5[%c0_9, %c0_10] : memref<2x1xf32, #tpu.memory_space<vmem>>, vector<2x1xf32>
    %cst_11 = arith.constant dense<0.000000e+00> : vector<2xf32>
    %14 = vector.multi_reduction <add>, %4, %cst_11 [1] : vector<2x8xf32> to vector<2xf32>
    %15 = vector.shape_cast %14 : vector<2xf32> to vector<2x1xf32>
    %16 = arith.addf %13, %15 : vector<2x1xf32>
    %c0_12 = arith.constant 0 : index
    %c0_13 = arith.constant 0 : index
    %17 = vector.load %arg5[%c0_12, %c0_13] : memref<2x1xf32, #tpu.memory_space<vmem>>, vector<2x1xf32>
    tpu.vector_store %arg5[%c0_12, %c0_13], %16 {strides = array<i32>} : memref<2x1xf32, #tpu.memory_space<vmem>>, vector<2x1xf32>,
    %c0_i32_14 = arith.constant 0 : i32
    %18 = arith.cmpi eq, %arg1, %c0_i32_14 : i32
    %19 = arith.extui %18 : i1 to i32
    %c0_i32_15 = arith.constant 0 : i32
    %20 = arith.cmpi ne, %19, %c0_i32_15 : i32
    scf.if %20 {
      %c0_16 = arith.constant 0 : index
      %c0_17 = arith.constant 0 : index
      %21 = vector.load %arg5[%c0_16, %c0_17] : memref<2x1xf32, #tpu.memory_space<vmem>>, vector<2x1xf32>
      %cst_18 = arith.constant 9.99999971E-10 : f32
      %22 = vector.broadcast %cst_18 : f32 to vector<2x1xf32>
      %23 = arith.maximumf %21, %22 : vector<2x1xf32>
      %c0_19 = arith.constant 0 : index
      %c0_20 = arith.constant 0 : index
      %24 = vector.load %arg4[%c0_19, %c0_20] : memref<2x32xf32, #tpu.memory_space<vmem>>, vector<2x32xf32>
      %25 = tpu.reciprocal %23 : vector<2x1xf32> -> vector<2x1xf32>
      %26 = vector.broadcast %25 : vector<2x1xf32> to vector<2x32xf32>
      %27 = arith.mulf %24, %26 : vector<2x32xf32>
      %c0_21 = arith.constant 0 : index
      %c0_22 = arith.constant 0 : index
      %28 = vector.load %arg4[%c0_21, %c0_22] : memref<2x32xf32, #tpu.memory_space<vmem>>, vector<2x32xf32>
      tpu.vector_store %arg4[%c0_21, %c0_22], %27 {strides = array<i32>} : memref<2x32xf32, #tpu.memory_space<vmem>>, vector<2x32xf32>,
    } else {
    }
    return
  }
  func.func @transform_0(%arg0: i32, %arg1: i32) -> (i32, i32, i32) {
    %c0_i32 = arith.constant 0 : i32
    %c0_i32_0 = arith.constant 0 : i32
    return %arg0, %arg1, %c0_i32 : i32, i32, i32
  }
  func.func @transform_1(%arg0: i32, %arg1: i32) -> (i32, i32) {
    %c0_i32 = arith.constant 0 : i32
    return %arg0, %arg1 : i32, i32
  }
  func.func @transform_2(%arg0: i32, %arg1: i32) -> (i32, i32) {
    %c0_i32 = arith.constant 0 : i32
    %c0_i32_0 = arith.constant 0 : i32
    return %arg0, %c0_i32 : i32, i32
  }
}

</mosaic_0001>

<llo_original>
// kernel: tpu_custom_call.1
$region0: #{tpu_custom_call.1}
  #allocation0 [shape = 'u32[]', space=smem, size = 0x4, offset = 0x4, fixed_abs, tag = 'smem constant byte address 0x4 - core index']
  #allocation1 [shape = 'u32[144,128]{1,0:T(1,128)}', space=vmem, size = 0x12000, scoped, tag = 'internal scratch']
  #allocation2 [shape = 'f32[2,1]{1,0:T(2,128)}', space=vmem, size = 0x400, scoped, tag = 'scratch operand']
  %s0 = inlined_call_operand.hbm [shape: f32[2,8,32], index: 0, kind: input, shape index: {}]
  %s1 = inlined_call_operand.vmem [shape: s32[2,8], index: 1, kind: input, shape index: {}]
  %s2 = inlined_call_operand.hbm [shape: f32[2,32], index: 2, kind: output, shape index: {}]
  %s3 = sld [smem:[#allocation0]]
  $region30: #{tpu_custom_call.1} parent=0
    _
  %s5 = ssub.s32 1, %s3
  %s6 = scalar_select 0, %s5, %s3
  $region1: #{tpu_custom_call.1} parent=0
    #allocation3 [shape = 'u8[8192]{0}', space=vmem, size = 0x2000, scoped, tag = 'input window, operand 0, single buffered']
    #allocation4 [shape = 's32[1]{0}', space=sflag, size = 0x4, scoped, tag = 'scoped memory for tpu_custom_call.1']
    #allocation5 [shape = 's32[1]{0}', space=sflag, size = 0x4, scoped, tag = 'scoped memory for tpu_custom_call.1']
    #allocation6 [shape = 'u8[1024]{0}', space=vmem, size = 0x400, scoped, tag = 'output window, operand 0, single buffered']
    %7 = vsyncpa [#allocation4], 0
    %8 = vsyncpa [#allocation5], 0
    // Predicated region
    $region2: #{tpu_custom_call.1} parent=1 // pred_check
      _
    $region3: #{tpu_custom_call.1} parent=1 // pred_check_branch
      %10 = sbr.rel (0) target = $region5
    $region4: #{tpu_custom_call.1} parent=1 // pred_region
      %s12 = ssub.s32 256, 256
      %13 = vsyncadd [#allocation4], %s12
      %s14 = sshll.u32 [#allocation3], 4
      %s15 = int_to_ptr.vmem [resolvable:$true] %s14
      %20 = dma.hbm_to_vmem [thread:$0]  %s0, 256, %s15, [#allocation4], 128, 128, 8
    $region5: #{tpu_custom_call.1} parent=1 // pred_fallthru
      _
    // Predicated region
    $region6: #{tpu_custom_call.1} parent=1 // pred_check
      _
    $region7: #{tpu_custom_call.1} parent=1 // pred_check_branch
      %22 = sbr.rel (0) target = $region9
    $region8: #{tpu_custom_call.1} parent=1 // pred_region
      _
    $region9: #{tpu_custom_call.1} parent=1 // pred_fallthru
      _
    // Predicated region
    $region10: #{tpu_custom_call.1} parent=1 // pred_check
      _
    $region11: #{tpu_custom_call.1} parent=1 // pred_check_branch
      %24 = sbr.rel (0) target = $region13
    $region12: #{tpu_custom_call.1} parent=1 // pred_region
      %25 = dma.done [#allocation4], 256
    $region13: #{tpu_custom_call.1} parent=1 // pred_fallthru
      _
    %p26 = scmp.eq.s32.totalorder 0, 0
    // Predicated region
    $region14: #{tpu_custom_call.1} parent=1 // pred_check
      %p27 = pneg %p26
    $region15: #{tpu_custom_call.1} parent=1 // pred_check_branch
      %29 = sbr.rel (%p27) target = $region17
    $region16: #{tpu_custom_call.1} parent=1 // pred_region
      %vm30 = vcmask 254976
      %31 = vst.msk [vmem:[#allocation6] sm:$0x3] %vm30, 0.0
      %vm32 = vcmask 1024
      %33 = vst.msk [vmem:[#allocation2] sm:$0x3] %vm32, 0.0
    $region17: #{tpu_custom_call.1} parent=1 // pred_fallthru
      _
    %v34 = vld [vmem:[%s1] sm:$0x3]
    %v35 = vcvt.s32.f32 %v34
    %v36 = vld [vmem:[#allocation3] sm:$0xff]
    %v37 = vld [vmem:[#allocation3 + $0x8] sm:$0xff]
    %v38 = vlaneseq
    %v39 = vshrl.u32 %v38, 7
    %v40 = vsub.s32 0, %v39
    %v41 = vrot.slane %v35, %v40
    %43 = vbcast.lane.b32.xlu0 %v41, 256
    %v44 = vpop.permute.xlu0 %43
    %v45 = vlaneseq
    %v46 = vshrl.u32 %v45, 7
    %v47 = vsub.s32 1, %v46
    %v48 = vrot.slane %v35, %v47
    %50 = vbcast.lane.b32.xlu0 %v48, 256
    %v51 = vpop.permute.xlu0 %50
    %v52 = vmul.f32 %v36, %v44
    %v53 = vmul.f32 %v37, %v51
    %v54 = vld [vmem:[#allocation6] sm:$0x3]
    %vm55 = vcmask 261120
    %v56 = vsel %vm55, %v52, 0.0
    %v57 = vrot.slane %v56, 4
    %v58 = vadd.f32 %v56, %v57
    %v59 = vrot.slane %v58, 2
    %v60 = vadd.f32 %v58, %v59
    %v61 = vrot.slane %v60, 1
    %v62 = vadd.f32 %v60, %v61
    %v63 = vsel %vm55, %v53, 0.0
    %v64 = vrot.slane %v63, 4
    %v65 = vadd.f32 %v63, %v64
    %v66 = vrot.slane %v65, 2
    %v67 = vadd.f32 %v65, %v66
    %v68 = vrot.slane %v67, 1
    %v69 = vadd.f32 %v67, %v68
    %vm72 = vcmask 1041409
    %v73 = vsel %vm72, %v69, %v62
    %v75 = vadd.f32 %v54, %v73
    %vm76 = vcmask 254976
    %77 = vst.msk [vmem:[#allocation6] sm:$0x3] %vm76, %v75
    %v78 = vld [vmem:[#allocation2] sm:$0x3]
    %vm79 = vcmask 58368
    %v80 = vsel %vm79, %v35, 0.0
    %81 = vadd.xlane.f32.xlu0 %v80
    %v82 = vpop.xlane.xlu0 %81
    %v83 = vadd.f32 %v78, %v82
    %vm84 = vcmask 1024
    %85 = vst.msk [vmem:[#allocation2] sm:$0x3] %vm84, %v83
    // Predicated region
    $region18: #{tpu_custom_call.1} parent=1 // pred_check
      %p86 = pneg %p26
    $region19: #{tpu_custom_call.1} parent=1 // pred_check_branch
      %88 = sbr.rel (%p86) target = $region21
    $region20: #{tpu_custom_call.1} parent=1 // pred_region
      %v89 = vld [vmem:[#allocation2] sm:$0x3]
      %v90 = vmax.f32 %v89, 1e-09
      %v91 = vld [vmem:[#allocation6] sm:$0x3]
      %v92 = vrcp.pop %v90
      %94 = vset.pattern.permute.xlu0 0
      %95 = vperm.xlu0 %94, %v92
      %v96 = vpop.permute.xlu0 %95
      %v98 = vmul.f32 %v91, %v96
      %99 = vst.msk [vmem:[#allocation6] sm:$0x3] %vm76, %v98
    $region21: #{tpu_custom_call.1} parent=1 // pred_fallthru
      _
    // Predicated region
    $region22: #{tpu_custom_call.1} parent=1 // pred_check
      _
    $region23: #{tpu_custom_call.1} parent=1 // pred_check_branch
      %101 = sbr.rel (0) target = $region25
    $region24: #{tpu_custom_call.1} parent=1 // pred_region
      %s103 = ssub.s32 32, 32
      %104 = vsyncadd [#allocation5], %s103
      %s106 = sshll.u32 [#allocation6], 4
      %s107 = int_to_ptr.vmem [resolvable:$true] %s106
      %109 = dma.vmem_to_hbm [thread:$0]  %s107, 32, %s2, [#allocation5]
    $region25: #{tpu_custom_call.1} parent=1 // pred_fallthru
      _
    // Predicated region
    $region26: #{tpu_custom_call.1} parent=1 // pred_check
      _
    $region27: #{tpu_custom_call.1} parent=1 // pred_check_branch
      %111 = sbr.rel (0) target = $region29
    $region28: #{tpu_custom_call.1} parent=1 // pred_region
      %112 = dma.done [#allocation5], 32
    $region29: #{tpu_custom_call.1} parent=1 // pred_fallthru
      _
    %113 = vsyncpa [#allocation4], 1
    %114 = vsyncpa [#allocation5], 1

</llo_original>
